<compile_context>
chip_gen: v5e
topology: v5e:2x2
jax: 0.10.0
libtpu: 0.0.40
codegen_flags: <defaults>
</compile_context>

<pallas_src>
import numpy as np

import jax
import jax.numpy as jnp
from jax.experimental import pallas as pl
from jax.experimental.pallas import tpu as pltpu


# ----------------------------------------------------------------------------
# Fused decoder kernel: a chain of (matmul + bias + activation) stages.
# ----------------------------------------------------------------------------
def _make_fused_kernel(acts):
    n_stage = len(acts)

    def kernel(*refs):
        x_ref = refs[0]
        o_ref = refs[-1]
        h = x_ref[...]                                   # (B, latent) f32
        for i in range(n_stage):
            w = refs[1 + 2 * i][...]                     # (in_i, out_i)  VMEM
            b = refs[2 + 2 * i][...]                     # (1, out_i)     VMEM
            h = jnp.dot(h, w, preferred_element_type=jnp.float32) + b
            if acts[i] == "relu":
                h = jnp.maximum(h, 0.0)
            elif acts[i] == "sigmoid":
                h = jax.nn.sigmoid(h)
        o_ref[...] = h.astype(o_ref.dtype)

    return kernel


# ----------------------------------------------------------------------------
# Init-time weight transforms (host-side, done once).
# ----------------------------------------------------------------------------
def _embed_fc_into_padded_nhwc(w, b, C, H, W, pad):
    """Remap the last FC layer so its output is directly the zero-padded,
    NHWC-flattened image consumed by the first transposed-conv stage.

    Torch: fc_out feature index = c*H*W + h*W + w  (reshape to (B, C, H, W)).
    New column index = ((pad+h)*Wp + (pad+w))*C + c, Wp = W + 2*pad; all other
    (padding) columns have zero weight and zero bias.
    """
    Hp, Wp = H + 2 * pad, W + 2 * pad
    we = np.zeros((w.shape[0], Hp * Wp * C), np.float64)
    be = np.zeros((1, Hp * Wp * C), np.float64)
    for c in range(C):
        for h in range(H):
            for ww in range(W):
                src = c * H * W + h * W + ww
                dst = ((pad + h) * Wp + (pad + ww)) * C + c
                we[:, dst] = w[:, src]
                be[0, dst] = b[src]
    return we, be


def _conv_transpose_as_dense(w_t, b, Hi, Wi, pad_next, last):
    """Dense operator for ConvTranspose2d(stride=1, padding=0).

    Input : zero-padded NHWC flat vector, padding P = K-1 per side,
            row index = (hp*Wp + wp)*IC + ic, Hp = Hi + 2P.
    Output: if not last -> the next layer's zero-padded NHWC flat input
            (padding = pad_next); if last -> channel-major (oc, ho, wo) flat
            output with no padding (matches an NCHW reshape outside).
    Uses ConvT(stride=1, pad=0) == full-padded direct conv with the spatially
    flipped, channel-transposed kernel:
            w_conv[kh, kw, ic, oc] = w_t[ic, oc, K-1-kh, K-1-kw].
    """
    IC, OC, K, _ = w_t.shape
    P = K - 1
    Hp, Wp = Hi + 2 * P, Wi + 2 * P
    Ho, Wo = Hi + K - 1, Wi + K - 1
    w_conv = np.transpose(w_t[:, :, ::-1, ::-1], (2, 3, 0, 1))  # (K, K, IC, OC)

    if last:
        n_cols = OC * Ho * Wo

        def col(ho, wo, oc):
            return (oc * Ho + ho) * Wo + wo
    else:
        Wq = Wo + 2 * pad_next
        n_cols = (Ho + 2 * pad_next) * Wq * OC

        def col(ho, wo, oc):
            return ((pad_next + ho) * Wq + (pad_next + wo)) * OC + oc

    T = np.zeros((Hp * Wp * IC, n_cols), np.float64)
    bias = np.zeros((1, n_cols), np.float64)
    for ho in range(Ho):
        for wo in range(Wo):
            for oc in range(OC):
                q = col(ho, wo, oc)
                bias[0, q] = b[oc]
                for kh in range(K):
                    for kw in range(K):
                        hp, wp = ho + kh, wo + kw
                        row = (hp * Wp + wp) * IC
                        T[row:row + IC, q] += w_conv[kh, kw, :, oc]
    return T, bias


# ----------------------------------------------------------------------------
# Decoder module (parameters created deterministically in-script)
# ----------------------------------------------------------------------------
class PallasDecoder:
    def __init__(self, latent_dim, config, key):
        self.fc_layers_num = config["fc_layers_num"]
        self.conv_layers_num = config["conv_layers_num"]
        cnn_dim = config["cnn_dim"]
        c0 = config["cnn_final_out_dim"]
        self.C0 = c0
        self.H = int((cnn_dim / c0) ** 0.5)
        self.W = self.H

        # --- layer shapes, exactly as in the PyTorch module ---
        fc_shapes = []
        fc_in = latent_dim
        for i in reversed(range(self.fc_layers_num - 1)):
            fc_shapes.append((fc_in, config[f"fc_out_features_{i}"]))
            fc_in = config[f"fc_out_features_{i}"]
        fc_shapes.append((fc_in, cnn_dim))

        conv_shapes = []
        next_in = c0
        for i in reversed(range(1, self.conv_layers_num)):
            conv_shapes.append((next_in, config[f"cnn_out_channels_{i}"],
                                config[f"cnn_kernel_size_{i}"]))
            next_in = config[f"cnn_out_channels_{i}"]
        conv_shapes.append((next_in, 1, config["cnn_kernel_size_0"]))

        # --- deterministic parameter init (torch-style uniform bounds) ---
        self.fc_params = []
        for fin, fout in fc_shapes:
            key, k1, k2 = jax.random.split(key, 3)
            bound = 1.0 / (fin ** 0.5)
            w = jax.random.uniform(k1, (fin, fout), jnp.float32, -bound, bound)
            b = jax.random.uniform(k2, (fout,), jnp.float32, -bound, bound)
            self.fc_params.append((w, b))

        self.conv_params = []
        for ic, oc, k in conv_shapes:
            key, k1, k2 = jax.random.split(key, 3)
            bound = 1.0 / ((ic * k * k) ** 0.5)
            w = jax.random.uniform(k1, (ic, oc, k, k), jnp.float32, -bound, bound)
            b = jax.random.uniform(k2, (oc,), jnp.float32, -bound, bound)
            self.conv_params.append((w, b))

        # --- precompute kernel-ready operator matrices (once) ---
        stage_w, stage_b, stage_acts = [], [], []

        # FC layers except the last: plain (in, out) matmuls + ReLU.
        for w, b in self.fc_params[:-1]:
            stage_w.append(np.asarray(w, np.float32))
            stage_b.append(np.asarray(b, np.float32).reshape(1, -1))
            stage_acts.append("relu")

        # Last FC layer: fold torch reshape + NCHW->NHWC relayout + conv-0
        # input zero-padding into the weights.
        k0 = conv_shapes[0][2]
        w_last, b_last = self.fc_params[-1]
        we, be = _embed_fc_into_padded_nhwc(np.asarray(w_last, np.float64),
                                            np.asarray(b_last, np.float64),
                                            self.C0, self.H, self.W, k0 - 1)
        stage_w.append(we.astype(np.float32))
        stage_b.append(be.astype(np.float32))
        stage_acts.append(None)

        # Transposed convs: each becomes one dense matmul whose output is the
        # (already zero-padded) NHWC flat input of the next layer, or the
        # channel-major flat output for the final layer.
        hi, wi = self.H, self.W
        for li, ((w_t, b), (ic, oc, k)) in enumerate(zip(self.conv_params, conv_shapes)):
            last = li == len(conv_shapes) - 1
            pad_next = 0 if last else (conv_shapes[li + 1][2] - 1)
            T, bias = _conv_transpose_as_dense(np.asarray(w_t, np.float64),
                                               np.asarray(b, np.float64),
                                               hi, wi, pad_next, last)
            stage_w.append(T.astype(np.float32))
            stage_b.append(bias.astype(np.float32))
            stage_acts.append("sigmoid" if last else "relu")
            hi, wi = hi + k - 1, wi + k - 1

        self.stage_w = [jnp.asarray(w) for w in stage_w]
        self.stage_b = [jnp.asarray(b) for b in stage_b]
        self.stage_acts = stage_acts
        self.out_chw = (conv_shapes[-1][1], hi, wi)

    def __call__(self, x):
        B = x.shape[0]
        oc, ho, wo = self.out_chw
        args = [x]
        for w, b in zip(self.stage_w, self.stage_b):
            args.append(w)
            args.append(b)
        out = pl.pallas_call(
            _make_fused_kernel(self.stage_acts),
            out_shape=jax.ShapeDtypeStruct((B, oc * ho * wo), jnp.float32),
            in_specs=[pl.BlockSpec(memory_space=pltpu.MemorySpace.VMEM)] * len(args),
            out_specs=pl.BlockSpec(memory_space=pltpu.MemorySpace.VMEM),
            # If B ever grows large: add a batch grid axis with
            # dimension_semantics=("parallel",) so v7x's two TensorCores split it,
            # and budget VMEM (weights ~1 MiB + activations) against 64 MiB.
        )(*args)
        # Free metadata reshape back to NCHW (columns are (oc, ho, wo)-ordered).
        return out.reshape(B, oc, ho, wo)


# ----------------------------------------------------------------------------
# Float64 NumPy reference of the original PyTorch forward (for self-check).
# ----------------------------------------------------------------------------
def _reference_forward(x, fc_params, conv_params):
    h = np.asarray(x, np.float64)
    for i, (w, b) in enumerate(fc_params):
        h = h @ np.asarray(w, np.float64) + np.asarray(b, np.float64)
        if i < len(fc_params) - 1:
            h = np.maximum(h, 0.0)
    B = h.shape[0]
    C = np.asarray(conv_params[0][0]).shape[0]
    H = W = int(round((h.shape[1] / C) ** 0.5))
    y = h.reshape(B, C, H, W)
    for li, (w, b) in enumerate(conv_params):
        w = np.asarray(w, np.float64)
        bb = np.asarray(b, np.float64)
        IC, OC, K, _ = w.shape
        Hi, Wi = y.shape[2], y.shape[3]
        out = np.zeros((B, OC, Hi + K - 1, Wi + K - 1), np.float64)
        for p in range(Hi):
            for q in range(Wi):
                out[:, :, p:p + K, q:q + K] += np.einsum("bi,iokl->bokl",
                                                         y[:, :, p, q], w)
        out += bb.reshape(1, OC, 1, 1)
        if li < len(conv_params) - 1:
            out = np.maximum(out, 0.0)
        else:
            out = 1.0 / (1.0 + np.exp(-out))
        y = out
    return y


# ----------------------------------------------------------------------------
if __name__ == "__main__":
    config = {
        "conv_layers_num": 2,
        "fc_layers_num": 2,
        "fc_out_features_0": 32,
        "cnn_dim": 64,
        "cnn_final_out_dim": 4,
        "cnn_out_channels_1": 8,
        "cnn_kernel_size_1": 3,
        "cnn_kernel_size_0": 3,
    }
    latent_dim = 8
    batch = 2

    key = jax.random.PRNGKey(0)
    key, pkey, xkey = jax.random.split(key, 3)

    decoder = PallasDecoder(latent_dim, config, pkey)
    x = jax.random.normal(xkey, (batch, latent_dim), dtype=jnp.float32)

    y = decoder(x)
    y = jax.block_until_ready(y)

    assert y.shape == (batch, 1, 8, 8), y.shape
    assert bool(jnp.all(jnp.isfinite(y)))
    assert bool(jnp.all((y >= 0.0) & (y <= 1.0)))  # sigmoid output range

    # Numerical check against the float64 NumPy reference of the torch forward.
    ref = _reference_forward(np.asarray(x), decoder.fc_params, decoder.conv_params)
    err = float(np.max(np.abs(np.asarray(y, np.float64) - ref)))
    assert np.allclose(np.asarray(y, np.float64), ref, atol=5e-3, rtol=5e-3), err

    print("KERNEL_OK")
</pallas_src>

<mosaic_0001>
module attributes {stable_mosaic.version = 11 : i64} {
  func.func @kernel(%arg0: memref<2x8xf32, #tpu.memory_space<vmem>>, %arg1: memref<8x32xf32, #tpu.memory_space<vmem>>, %arg2: memref<1x32xf32, #tpu.memory_space<vmem>>, %arg3: memref<32x256xf32, #tpu.memory_space<vmem>>, %arg4: memref<1x256xf32, #tpu.memory_space<vmem>>, %arg5: memref<256x800xf32, #tpu.memory_space<vmem>>, %arg6: memref<1x800xf32, #tpu.memory_space<vmem>>, %arg7: memref<800x64xf32, #tpu.memory_space<vmem>>, %arg8: memref<1x64xf32, #tpu.memory_space<vmem>>, %arg9: memref<2x64xf32, #tpu.memory_space<vmem>>) attributes {dimension_semantics = [], scalar_prefetch = 0 : i64, scratch_operands = 0 : i64, tpu.core_type = #tpu.core_type<tc>} {
    %c0 = arith.constant 0 : index
    %c0_0 = arith.constant 0 : index
    %0 = vector.load %arg0[%c0, %c0_0] : memref<2x8xf32, #tpu.memory_space<vmem>>, vector<2x8xf32>
    %c0_1 = arith.constant 0 : index
    %c0_2 = arith.constant 0 : index
    %1 = vector.load %arg1[%c0_1, %c0_2] : memref<8x32xf32, #tpu.memory_space<vmem>>, vector<8x32xf32>
    %c0_3 = arith.constant 0 : index
    %c0_4 = arith.constant 0 : index
    %2 = vector.load %arg2[%c0_3, %c0_4] : memref<1x32xf32, #tpu.memory_space<vmem>>, vector<1x32xf32>
    %cst = arith.constant dense<0.000000e+00> : vector<2x32xf32>
    %3 = tpu.matmul %0, %1, %cst {dimension_numbers = #tpu.dot_dimension_numbers<[1], [0], [0], [1], [0, 0, 1, 1], [], []>} : vector<2x8xf32>, vector<8x32xf32>, vector<2x32xf32> -> vector<2x32xf32>
    %4 = vector.broadcast %2 : vector<1x32xf32> to vector<2x32xf32>
    %5 = arith.addf %3, %4 : vector<2x32xf32>
    %cst_5 = arith.constant 0.000000e+00 : f32
    %6 = vector.broadcast %cst_5 : f32 to vector<2x32xf32>
    %7 = arith.maximumf %5, %6 : vector<2x32xf32>
    %c0_6 = arith.constant 0 : index
    %c0_7 = arith.constant 0 : index
    %8 = vector.load %arg3[%c0_6, %c0_7] : memref<32x256xf32, #tpu.memory_space<vmem>>, vector<32x256xf32>
    %c0_8 = arith.constant 0 : index
    %c0_9 = arith.constant 0 : index
    %9 = vector.load %arg4[%c0_8, %c0_9] : memref<1x256xf32, #tpu.memory_space<vmem>>, vector<1x256xf32>
    %cst_10 = arith.constant dense<0.000000e+00> : vector<2x256xf32>
    %10 = tpu.matmul %7, %8, %cst_10 {dimension_numbers = #tpu.dot_dimension_numbers<[1], [0], [0], [1], [0, 0, 1, 1], [], []>} : vector<2x32xf32>, vector<32x256xf32>, vector<2x256xf32> -> vector<2x256xf32>
    %11 = vector.broadcast %9 : vector<1x256xf32> to vector<2x256xf32>
    %12 = arith.addf %10, %11 : vector<2x256xf32>
    %c0_11 = arith.constant 0 : index
    %c0_12 = arith.constant 0 : index
    %13 = vector.load %arg5[%c0_11, %c0_12] : memref<256x800xf32, #tpu.memory_space<vmem>>, vector<256x800xf32>
    %c0_13 = arith.constant 0 : index
    %c0_14 = arith.constant 0 : index
    %14 = vector.load %arg6[%c0_13, %c0_14] : memref<1x800xf32, #tpu.memory_space<vmem>>, vector<1x800xf32>
    %cst_15 = arith.constant dense<0.000000e+00> : vector<2x800xf32>
    %15 = tpu.matmul %12, %13, %cst_15 {dimension_numbers = #tpu.dot_dimension_numbers<[1], [0], [0], [1], [0, 0, 1, 1], [], []>} : vector<2x256xf32>, vector<256x800xf32>, vector<2x800xf32> -> vector<2x800xf32>
    %16 = vector.broadcast %14 : vector<1x800xf32> to vector<2x800xf32>
    %17 = arith.addf %15, %16 : vector<2x800xf32>
    %cst_16 = arith.constant 0.000000e+00 : f32
    %18 = vector.broadcast %cst_16 : f32 to vector<2x800xf32>
    %19 = arith.maximumf %17, %18 : vector<2x800xf32>
    %c0_17 = arith.constant 0 : index
    %c0_18 = arith.constant 0 : index
    %20 = vector.load %arg7[%c0_17, %c0_18] : memref<800x64xf32, #tpu.memory_space<vmem>>, vector<800x64xf32>
    %c0_19 = arith.constant 0 : index
    %c0_20 = arith.constant 0 : index
    %21 = vector.load %arg8[%c0_19, %c0_20] : memref<1x64xf32, #tpu.memory_space<vmem>>, vector<1x64xf32>
    %cst_21 = arith.constant dense<0.000000e+00> : vector<2x64xf32>
    %22 = tpu.matmul %19, %20, %cst_21 {dimension_numbers = #tpu.dot_dimension_numbers<[1], [0], [0], [1], [0, 0, 1, 1], [], []>} : vector<2x800xf32>, vector<800x64xf32>, vector<2x64xf32> -> vector<2x64xf32>
    %23 = vector.broadcast %21 : vector<1x64xf32> to vector<2x64xf32>
    %24 = arith.addf %22, %23 : vector<2x64xf32>
    %25 = arith.negf %24 : vector<2x64xf32>
    %26 = math.exp %25 : vector<2x64xf32>
    %cst_22 = arith.constant 1.000000e+00 : f32
    %27 = vector.broadcast %cst_22 : f32 to vector<2x64xf32>
    %28 = arith.addf %27, %26 : vector<2x64xf32>
    %29 = arith.divf %27, %28 : vector<2x64xf32>
    %c0_23 = arith.constant 0 : index
    %c0_24 = arith.constant 0 : index
    %30 = vector.load %arg9[%c0_23, %c0_24] : memref<2x64xf32, #tpu.memory_space<vmem>>, vector<2x64xf32>
    tpu.vector_store %arg9[%c0_23, %c0_24], %29 {strides = array<i32>} : memref<2x64xf32, #tpu.memory_space<vmem>>, vector<2x64xf32>,
    return
  }
}

</mosaic_0001>

<llo_original>
// kernel: tpu_custom_call.1
$region0: #{tpu_custom_call.1}
  #allocation0 [shape = 'u32[]', space=smem, size = 0x4, offset = 0x4, fixed_abs, tag = 'smem constant byte address 0x4 - core index']
  #allocation1 [shape = 'u32[72,128]{1,0:T(1,128)}', space=vmem, size = 0x9000, scoped, tag = 'internal scratch']
  %s0 = inlined_call_operand.vmem [shape: f32[2,8], index: 0, kind: input, shape index: {}]
  %s1 = inlined_call_operand.vmem [shape: f32[8,32], index: 1, kind: input, shape index: {}]
  %s2 = inlined_call_operand.vmem [shape: f32[1,32], index: 2, kind: input, shape index: {}]
  %s3 = inlined_call_operand.vmem [shape: f32[32,256], index: 3, kind: input, shape index: {}]
  %s4 = inlined_call_operand.vmem [shape: f32[1,256], index: 4, kind: input, shape index: {}]
  %s5 = inlined_call_operand.vmem [shape: f32[256,800], index: 5, kind: input, shape index: {}]
  %s6 = inlined_call_operand.vmem [shape: f32[1,800], index: 6, kind: input, shape index: {}]
  %s7 = inlined_call_operand.vmem [shape: f32[800,64], index: 7, kind: input, shape index: {}]
  %s8 = inlined_call_operand.vmem [shape: f32[1,64], index: 8, kind: input, shape index: {}]
  %s9 = inlined_call_operand.hbm [shape: f32[2,64], index: 9, kind: output, shape index: {}]
  %s10 = sld [smem:[#allocation0]]
  $region46: #{tpu_custom_call.1} parent=0
    _
  %s12 = ssub.s32 1, %s10
  %s13 = scalar_select 0, %s12, %s10
  $region1: #{tpu_custom_call.1} parent=0
    #allocation2 [shape = 'u8[1024]{0}', space=vmem, size = 0x400, scoped, tag = 'output window, operand 0, single buffered']
    #allocation3 [shape = 's32[1]{0}', space=sflag, size = 0x4, scoped, tag = 'scoped memory for tpu_custom_call.1']
    %14 = vsyncpa [#allocation3], 0
    // Predicated region
    $region2: #{tpu_custom_call.1} parent=1 // pred_check
      _
    $region3: #{tpu_custom_call.1} parent=1 // pred_check_branch
      %16 = sbr.rel (0) target = $region5
    $region4: #{tpu_custom_call.1} parent=1 // pred_region
      _
    $region5: #{tpu_custom_call.1} parent=1 // pred_fallthru
      _
    // Predicated region
    $region6: #{tpu_custom_call.1} parent=1 // pred_check
      _
    $region7: #{tpu_custom_call.1} parent=1 // pred_check_branch
      %18 = sbr.rel (0) target = $region9
    $region8: #{tpu_custom_call.1} parent=1 // pred_region
      _
    $region9: #{tpu_custom_call.1} parent=1 // pred_fallthru
      _
    // Predicated region
    $region10: #{tpu_custom_call.1} parent=1 // pred_check
      _
    $region11: #{tpu_custom_call.1} parent=1 // pred_check_branch
      %20 = sbr.rel (0) target = $region13
    $region12: #{tpu_custom_call.1} parent=1 // pred_region
      _
    $region13: #{tpu_custom_call.1} parent=1 // pred_fallthru
      _
    // Predicated region
    $region14: #{tpu_custom_call.1} parent=1 // pred_check
      _
    $region15: #{tpu_custom_call.1} parent=1 // pred_check_branch
      %22 = sbr.rel (0) target = $region17
    $region16: #{tpu_custom_call.1} parent=1 // pred_region
      _
    $region17: #{tpu_custom_call.1} parent=1 // pred_fallthru
      _
    // Predicated region
    $region18: #{tpu_custom_call.1} parent=1 // pred_check
      _
    $region19: #{tpu_custom_call.1} parent=1 // pred_check_branch
      %24 = sbr.rel (0) target = $region21
    $region20: #{tpu_custom_call.1} parent=1 // pred_region
      _
    $region21: #{tpu_custom_call.1} parent=1 // pred_fallthru
      _
    // Predicated region
    $region22: #{tpu_custom_call.1} parent=1 // pred_check
      _
    $region23: #{tpu_custom_call.1} parent=1 // pred_check_branch
      %26 = sbr.rel (0) target = $region25
    $region24: #{tpu_custom_call.1} parent=1 // pred_region
      _
    $region25: #{tpu_custom_call.1} parent=1 // pred_fallthru
      _
    // Predicated region
    $region26: #{tpu_custom_call.1} parent=1 // pred_check
      _
    $region27: #{tpu_custom_call.1} parent=1 // pred_check_branch
      %28 = sbr.rel (0) target = $region29
    $region28: #{tpu_custom_call.1} parent=1 // pred_region
      _
    $region29: #{tpu_custom_call.1} parent=1 // pred_fallthru
      _
    // Predicated region
    $region30: #{tpu_custom_call.1} parent=1 // pred_check
      _
    $region31: #{tpu_custom_call.1} parent=1 // pred_check_branch
      %30 = sbr.rel (0) target = $region33
    $region32: #{tpu_custom_call.1} parent=1 // pred_region
      _
    $region33: #{tpu_custom_call.1} parent=1 // pred_fallthru
      _
    // Predicated region
    $region34: #{tpu_custom_call.1} parent=1 // pred_check
      _
    $region35: #{tpu_custom_call.1} parent=1 // pred_check_branch
      %32 = sbr.rel (0) target = $region37
    $region36: #{tpu_custom_call.1} parent=1 // pred_region
      _
    $region37: #{tpu_custom_call.1} parent=1 // pred_fallthru
      _
    %v33 = vld [vmem:[%s0] sm:$0x3]
    %v34 = vld [vmem:[%s1] sm:$0xff]
    %v35 = vld [vmem:[%s2] sm:$0x1]
    %v37 = vperm.slane %v35, 0
    %vm39 = vcmask 64512
    %v41 = vsel %vm39, %v33, 0
    %43 = vmatpush.msra.mxu0 0.0
    %44 = vmatpush.msra.mxu0 0.0
    %45 = vmatpush.msra.mxu0 0.0
    %46 = vmatpush.msra.mxu0 0.0
    %47 = vmatpush.msra.mxu0 0.0
    %48 = vmatpush.msra.mxu0 0.0
    %49 = vmatpush.msra.mxu0 0.0
    %50 = vmatpush.msra.mxu0 0.0
    %51 = vmatpush.msra.mxu0 0.0
    %52 = vmatpush.msra.mxu0 0.0
    %53 = vmatpush.msra.mxu0 0.0
    %54 = vmatpush.msra.mxu0 0.0
    %55 = vmatpush.msra.mxu0 0.0
    %56 = vmatpush.msra.mxu0 0.0
    %57 = vmatpush.msra.mxu0 0.0
    %58 = vmatpush.msra.mxu0 %v34
    %59 = vmatmul.f32.gmra.mxu0 %v41
    %v60 = vpop.f32.mrf.mxu0
    %v61 = vadd.f32 %v37, %v60
    %62 = vdwg.mxu0
    %v63 = vmax.f32 %v61, 0.0
    %v64 = vld [vmem:[%s3] sm:$0xff]
    %v65 = vld [vmem:[%s3 + $0x8] sm:$0xff]
    %v66 = vld [vmem:[%s3 + $0x10] sm:$0xff]
    %v67 = vld [vmem:[%s3 + $0x18] sm:$0xff]
    %v68 = vld [vmem:[%s3 + $0x20] sm:$0xff]
    %v69 = vld [vmem:[%s3 + $0x28] sm:$0xff]
    %v70 = vld [vmem:[%s3 + $0x30] sm:$0xff]
    %v71 = vld [vmem:[%s3 + $0x38] sm:$0xff]
    %v72 = vld [vmem:[%s4] sm:$0x3]
    %v74 = vperm.slane %v72, 0
    %v75 = vperm.slane %v72, 1
    %vm78 = vcmask 261120
    %v80 = vsel %vm78, %v63, 0
    %82 = vmatpush.msra.mxu0 0.0
    %83 = vmatpush.msra.mxu0 0.0
    %84 = vmatpush.msra.mxu0 0.0
    %85 = vmatpush.msra.mxu0 0.0
    %86 = vmatpush.msra.mxu0 0.0
    %87 = vmatpush.msra.mxu0 0.0
    %88 = vmatpush.msra.mxu0 0.0
    %89 = vmatpush.msra.mxu0 0.0
    %90 = vmatpush.msra.mxu0 0.0
    %91 = vmatpush.msra.mxu0 0.0
    %92 = vmatpush.msra.mxu0 0.0
    %93 = vmatpush.msra.mxu0 0.0
    %94 = vmatpush.msra.mxu0 %v70
    %95 = vmatpush.msra.mxu0 %v68
    %96 = vmatpush.msra.mxu0 %v66
    %97 = vmatpush.msra.mxu0 %v64
    %98 = vmatmul.f32.gmra.mxu0 %v80
    %v99 = vpop.f32.mrf.mxu0
    %v100 = vadd.f32 %v74, %v99
    %101 = vdwg.mxu0
    %102 = vmatpush.msra.mxu0 0.0
    %103 = vmatpush.msra.mxu0 0.0
    %104 = vmatpush.msra.mxu0 0.0
    %105 = vmatpush.msra.mxu0 0.0
    %106 = vmatpush.msra.mxu0 0.0
    %107 = vmatpush.msra.mxu0 0.0
    %108 = vmatpush.msra.mxu0 0.0
    %109 = vmatpush.msra.mxu0 0.0
    %110 = vmatpush.msra.mxu0 0.0
    %111 = vmatpush.msra.mxu0 0.0
    %112 = vmatpush.msra.mxu0 0.0
    %113 = vmatpush.msra.mxu0 0.0
    %114 = vmatpush.msra.mxu0 %v71
    %115 = vmatpush.msra.mxu0 %v69
    %116 = vmatpush.msra.mxu0 %v67
    %117 = vmatpush.msra.mxu0 %v65
    %118 = vmatmul.f32.gmra.mxu0 %v80
    %v119 = vpop.f32.mrf.mxu0
    %v120 = vadd.f32 %v75, %v119
    %121 = vdwg.mxu0
    %v122 = vld [vmem:[%s5] sm:$0xff]
    %v123 = vld [vmem:[%s5 + $0x8] sm:$0xff]
    %v124 = vld [vmem:[%s5 + $0x10] sm:$0xff]
    %v125 = vld [vmem:[%s5 + $0x18] sm:$0xff]
    %v126 = vld [vmem:[%s5 + $0x20] sm:$0xff]
    %v127 = vld [vmem:[%s5 + $0x28] sm:$0xff]
    %v128 = vld [vmem:[%s5 + $0x30] sm:$0xff]
    %v129 = vld [vmem:[%s5 + $0x38] sm:$0xff]
    %v130 = vld [vmem:[%s5 + $0x40] sm:$0xff]
    %v131 = vld [vmem:[%s5 + $0x48] sm:$0xff]
    %v132 = vld [vmem:[%s5 + $0x50] sm:$0xff]
    %v133 = vld [vmem:[%s5 + $0x58] sm:$0xff]
    %v134 = vld [vmem:[%s5 + $0x60] sm:$0xff]
    %v135 = vld [vmem:[%s5 + $0x68] sm:$0xff]
    %v136 = vld [vmem:[%s5 + $0x70] sm:$0xff]
    %v137 = vld [vmem:[%s5 + $0x78] sm:$0xff]
    %v138 = vld [vmem:[%s5 + $0x80] sm:$0xff]
    %v139 = vld [vmem:[%s5 + $0x88] sm:$0xff]
    %v140 = vld [vmem:[%s5 + $0x90] sm:$0xff]
    %v141 = vld [vmem:[%s5 + $0x98] sm:$0xff]
    %v142 = vld [vmem:[%s5 + $0xa0] sm:$0xff]
    %v143 = vld [vmem:[%s5 + $0xa8] sm:$0xff]
    %v144 = vld [vmem:[%s5 + $0xb0] sm:$0xff]
    %v145 = vld [vmem:[%s5 + $0xb8] sm:$0xff]
    %v146 = vld [vmem:[%s5 + $0xc0] sm:$0xff]
    %v147 = vld [vmem:[%s5 + $0xc8] sm:$0xff]
    %v148 = vld [vmem:[%s5 + $0xd0] sm:$0xff]
    %v149 = vld [vmem:[%s5 + $0xd8] sm:$0xff]
    %v150 = vld [vmem:[%s5 + $0xe0] sm:$0xff]
    %v151 = vld [vmem:[%s5 + $0xe8] sm:$0xff]
    %v152 = vld [vmem:[%s5 + $0xf0] sm:$0xff]
    %v153 = vld [vmem:[%s5 + $0xf8] sm:$0xff]
    %v154 = vld [vmem:[%s5 + $0x100] sm:$0xff]
    %v155 = vld [vmem:[%s5 + $0x108] sm:$0xff]
    %v156 = vld [vmem:[%s5 + $0x110] sm:$0xff]
    %v157 = vld [vmem:[%s5 + $0x118] sm:$0xff]
    %v158 = vld [vmem:[%s5 + $0x120] sm:$0xff]
    %v159 = vld [vmem:[%s5 + $0x128] sm:$0xff]
    %v160 = vld [vmem:[%s5 + $0x130] sm:$0xff]
    %v161 = vld [vmem:[%s5 + $0x138] sm:$0xff]
    %v162 = vld [vmem:[%s5 + $0x140] sm:$0xff]
    %v163 = vld [vmem:[%s5 + $0x148] sm:$0xff]
    %v164 = vld [vmem:[%s5 + $0x150] sm:$0xff]
    %v165 = vld [vmem:[%s5 + $0x158] sm:$0xff]
    %v166 = vld [vmem:[%s5 + $0x160] sm:$0xff]
    %v167 = vld [vmem:[%s5 + $0x168] sm:$0xff]
    %v168 = vld [vmem:[%s5 + $0x170] sm:$0xff]
    %v169 = vld [vmem:[%s5 + $0x178] sm:$0xff]
    %v170 = vld [vmem:[%s5 + $0x180] sm:$0xff]
    %v171 = vld [vmem:[%s5 + $0x188] sm:$0xff]
    %v172 = vld [vmem:[%s5 + $0x190] sm:$0xff]
    %v173 = vld [vmem:[%s5 + $0x198] sm:$0xff]
    %v174 = vld [vmem:[%s5 + $0x1a0] sm:$0xff]
    %v175 = vld [vmem:[%s5 + $0x1a8] sm:$0xff]
    %v176 = vld [vmem:[%s5 + $0x1b0] sm:$0xff]
    %v177 = vld [vmem:[%s5 + $0x1b8] sm:$0xff]
    %v178 = vld [vmem:[%s5 + $0x1c0] sm:$0xff]
    %v179 = vld [vmem:[%s5 + $0x1c8] sm:$0xff]
    %v180 = vld [vmem:[%s5 + $0x1d0] sm:$0xff]
    %v181 = vld [vmem:[%s5 + $0x1d8] sm:$0xff]
    %v182 = vld [vmem:[%s5 + $0x1e0] sm:$0xff]
    %v183 = vld [vmem:[%s5 + $0x1e8] sm:$0xff]
    %v184 = vld [vmem:[%s5 + $0x1f0] sm:$0xff]
    %v185 = vld [vmem:[%s5 + $0x1f8] sm:$0xff]
    %v186 = vld [vmem:[%s5 + $0x200] sm:$0xff]
    %v187 = vld [vmem:[%s5 + $0x208] sm:$0xff]
    %v188 = vld [vmem:[%s5 + $0x210] sm:$0xff]
    %v189 = vld [vmem:[%s5 + $0x218] sm:$0xff]
    %v190 = vld [vmem:[%s5 + $0x220] sm:$0xff]
    %v191 = vld [vmem:[%s5 + $0x228] sm:$0xff]
    %v192 = vld [vmem:[%s5 + $0x230] sm:$0xff]
    %v193 = vld [vmem:[%s5 + $0x238] sm:$0xff]
    %v194 = vld [vmem:[%s5 + $0x240] sm:$0xff]
    %v195 = vld [vmem:[%s5 + $0x248] sm:$0xff]
    %v196 = vld [vmem:[%s5 + $0x250] sm:$0xff]
    %v197 = vld [vmem:[%s5 + $0x258] sm:$0xff]
    %v198 = vld [vmem:[%s5 + $0x260] sm:$0xff]
    %v199 = vld [vmem:[%s5 + $0x268] sm:$0xff]
    %v200 = vld [vmem:[%s5 + $0x270] sm:$0xff]
    %v201 = vld [vmem:[%s5 + $0x278] sm:$0xff]
    %v202 = vld [vmem:[%s5 + $0x280] sm:$0xff]
    %v203 = vld [vmem:[%s5 + $0x288] sm:$0xff]
    %v204 = vld [vmem:[%s5 + $0x290] sm:$0xff]
    %v205 = vld [vmem:[%s5 + $0x298] sm:$0xff]
    %v206 = vld [vmem:[%s5 + $0x2a0] sm:$0xff]
    %v207 = vld [vmem:[%s5 + $0x2a8] sm:$0xff]
    %v208 = vld [vmem:[%s5 + $0x2b0] sm:$0xff]
    %v209 = vld [vmem:[%s5 + $0x2b8] sm:$0xff]
    %v210 = vld [vmem:[%s5 + $0x2c0] sm:$0xff]
    %v211 = vld [vmem:[%s5 + $0x2c8] sm:$0xff]
    %v212 = vld [vmem:[%s5 + $0x2d0] sm:$0xff]
    %v213 = vld [vmem:[%s5 + $0x2d8] sm:$0xff]
    %v214 = vld [vmem:[%s5 + $0x2e0] sm:$0xff]
    %v215 = vld [vmem:[%s5 + $0x2e8] sm:$0xff]
    %v216 = vld [vmem:[%s5 + $0x2f0] sm:$0xff]
    %v217 = vld [vmem:[%s5 + $0x2f8] sm:$0xff]
    %v218 = vld [vmem:[%s5 + $0x300] sm:$0xff]
    %v219 = vld [vmem:[%s5 + $0x308] sm:$0xff]
    %v220 = vld [vmem:[%s5 + $0x310] sm:$0xff]
    %v221 = vld [vmem:[%s5 + $0x318] sm:$0xff]
    %v222 = vld [vmem:[%s5 + $0x320] sm:$0xff]
    %v223 = vld [vmem:[%s5 + $0x328] sm:$0xff]
    %v224 = vld [vmem:[%s5 + $0x330] sm:$0xff]
    %v225 = vld [vmem:[%s5 + $0x338] sm:$0xff]
    %v226 = vld [vmem:[%s5 + $0x340] sm:$0xff]
    %v227 = vld [vmem:[%s5 + $0x348] sm:$0xff]
    %v228 = vld [vmem:[%s5 + $0x350] sm:$0xff]
    %v229 = vld [vmem:[%s5 + $0x358] sm:$0xff]
    %v230 = vld [vmem:[%s5 + $0x360] sm:$0xff]
    %v231 = vld [vmem:[%s5 + $0x368] sm:$0xff]
    %v232 = vld [vmem:[%s5 + $0x370] sm:$0xff]
    %v233 = vld [vmem:[%s5 + $0x378] sm:$0xff]
    %v234 = vld [vmem:[%s5 + $0x380] sm:$0xff]
    %v235 = vld [vmem:[%s5 + $0x388] sm:$0xff]
    %v236 = vld [vmem:[%s5 + $0x390] sm:$0xff]
    %v237 = vld [vmem:[%s5 + $0x398] sm:$0xff]
    %v238 = vld [vmem:[%s5 + $0x3a0] sm:$0xff]
    %v239 = vld [vmem:[%s5 + $0x3a8] sm:$0xff]
    %v240 = vld [vmem:[%s5 + $0x3b0] sm:$0xff]
    %v241 = vld [vmem:[%s5 + $0x3b8] sm:$0xff]
    %v242 = vld [vmem:[%s5 + $0x3c0] sm:$0xff]
    %v243 = vld [vmem:[%s5 + $0x3c8] sm:$0xff]
    %v244 = vld [vmem:[%s5 + $0x3d0] sm:$0xff]
    %v245 = vld [vmem:[%s5 + $0x3d8] sm:$0xff]
    %v246 = vld [vmem:[%s5 + $0x3e0] sm:$0xff]
    %v247 = vld [vmem:[%s5 + $0x3e8] sm:$0xff]
    %v248 = vld [vmem:[%s5 + $0x3f0] sm:$0xff]
    %v249 = vld [vmem:[%s5 + $0x3f8] sm:$0xff]
    %v250 = vld [vmem:[%s5 + $0x400] sm:$0xff]
    %v251 = vld [vmem:[%s5 + $0x408] sm:$0xff]
    %v252 = vld [vmem:[%s5 + $0x410] sm:$0xff]
    %v253 = vld [vmem:[%s5 + $0x418] sm:$0xff]
    %v254 = vld [vmem:[%s5 + $0x420] sm:$0xff]
    %v255 = vld [vmem:[%s5 + $0x428] sm:$0xff]
    %v256 = vld [vmem:[%s5 + $0x430] sm:$0xff]
    %v257 = vld [vmem:[%s5 + $0x438] sm:$0xff]
    %v258 = vld [vmem:[%s5 + $0x440] sm:$0xff]
    %v259 = vld [vmem:[%s5 + $0x448] sm:$0xff]
    %v260 = vld [vmem:[%s5 + $0x450] sm:$0xff]
    %v261 = vld [vmem:[%s5 + $0x458] sm:$0xff]
    %v262 = vld [vmem:[%s5 + $0x460] sm:$0xff]
    %v263 = vld [vmem:[%s5 + $0x468] sm:$0xff]
    %v264 = vld [vmem:[%s5 + $0x470] sm:$0xff]
    %v265 = vld [vmem:[%s5 + $0x478] sm:$0xff]
    %v266 = vld [vmem:[%s5 + $0x480] sm:$0xff]
    %v267 = vld [vmem:[%s5 + $0x488] sm:$0xff]
    %v268 = vld [vmem:[%s5 + $0x490] sm:$0xff]
    %v269 = vld [vmem:[%s5 + $0x498] sm:$0xff]
    %v270 = vld [vmem:[%s5 + $0x4a0] sm:$0xff]
    %v271 = vld [vmem:[%s5 + $0x4a8] sm:$0xff]
    %v272 = vld [vmem:[%s5 + $0x4b0] sm:$0xff]
    %v273 = vld [vmem:[%s5 + $0x4b8] sm:$0xff]
    %v274 = vld [vmem:[%s5 + $0x4c0] sm:$0xff]
    %v275 = vld [vmem:[%s5 + $0x4c8] sm:$0xff]
    %v276 = vld [vmem:[%s5 + $0x4d0] sm:$0xff]
    %v277 = vld [vmem:[%s5 + $0x4d8] sm:$0xff]
    %v278 = vld [vmem:[%s5 + $0x4e0] sm:$0xff]
    %v279 = vld [vmem:[%s5 + $0x4e8] sm:$0xff]
    %v280 = vld [vmem:[%s5 + $0x4f0] sm:$0xff]
    %v281 = vld [vmem:[%s5 + $0x4f8] sm:$0xff]
    %v282 = vld [vmem:[%s5 + $0x500] sm:$0xff]
    %v283 = vld [vmem:[%s5 + $0x508] sm:$0xff]
    %v284 = vld [vmem:[%s5 + $0x510] sm:$0xff]
    %v285 = vld [vmem:[%s5 + $0x518] sm:$0xff]
    %v286 = vld [vmem:[%s5 + $0x520] sm:$0xff]
    %v287 = vld [vmem:[%s5 + $0x528] sm:$0xff]
    %v288 = vld [vmem:[%s5 + $0x530] sm:$0xff]
    %v289 = vld [vmem:[%s5 + $0x538] sm:$0xff]
    %v290 = vld [vmem:[%s5 + $0x540] sm:$0xff]
    %v291 = vld [vmem:[%s5 + $0x548] sm:$0xff]
    %v292 = vld [vmem:[%s5 + $0x550] sm:$0xff]
    %v293 = vld [vmem:[%s5 + $0x558] sm:$0xff]
    %v294 = vld [vmem:[%s5 + $0x560] sm:$0xff]
    %v295 = vld [vmem:[%s5 + $0x568] sm:$0xff]
    %v296 = vld [vmem:[%s5 + $0x570] sm:$0xff]
    %v297 = vld [vmem:[%s5 + $0x578] sm:$0xff]
    %v298 = vld [vmem:[%s5 + $0x580] sm:$0xff]
    %v299 = vld [vmem:[%s5 + $0x588] sm:$0xff]
    %v300 = vld [vmem:[%s5 + $0x590] sm:$0xff]
    %v301 = vld [vmem:[%s5 + $0x598] sm:$0xff]
    %v302 = vld [vmem:[%s5 + $0x5a0] sm:$0xff]
    %v303 = vld [vmem:[%s5 + $0x5a8] sm:$0xff]
    %v304 = vld [vmem:[%s5 + $0x5b0] sm:$0xff]
    %v305 = vld [vmem:[%s5 + $0x5b8] sm:$0xff]
    %v306 = vld [vmem:[%s5 + $0x5c0] sm:$0xff]
    %v307 = vld [vmem:[%s5 + $0x5c8] sm:$0xff]
    %v308 = vld [vmem:[%s5 + $0x5d0] sm:$0xff]
    %v309 = vld [vmem:[%s5 + $0x5d8] sm:$0xff]
    %v310 = vld [vmem:[%s5 + $0x5e0] sm:$0xff]
    %v311 = vld [vmem:[%s5 + $0x5e8] sm:$0xff]
    %v312 = vld [vmem:[%s5 + $0x5f0] sm:$0xff]
    %v313 = vld [vmem:[%s5 + $0x5f8] sm:$0xff]
    %v314 = vld [vmem:[%s5 + $0x600] sm:$0xff]
    %v315 = vld [vmem:[%s5 + $0x608] sm:$0xff]
    %v316 = vld [vmem:[%s5 + $0x610] sm:$0xff]
    %v317 = vld [vmem:[%s5 + $0x618] sm:$0xff]
    %v318 = vld [vmem:[%s5 + $0x620] sm:$0xff]
    %v319 = vld [vmem:[%s5 + $0x628] sm:$0xff]
    %v320 = vld [vmem:[%s5 + $0x630] sm:$0xff]
    %v321 = vld [vmem:[%s5 + $0x638] sm:$0xff]
    %v322 = vld [vmem:[%s5 + $0x640] sm:$0xff]
    %v323 = vld [vmem:[%s5 + $0x648] sm:$0xff]
    %v324 = vld [vmem:[%s5 + $0x650] sm:$0xff]
    %v325 = vld [vmem:[%s5 + $0x658] sm:$0xff]
    %v326 = vld [vmem:[%s5 + $0x660] sm:$0xff]
    %v327 = vld [vmem:[%s5 + $0x668] sm:$0xff]
    %v328 = vld [vmem:[%s5 + $0x670] sm:$0xff]
    %v329 = vld [vmem:[%s5 + $0x678] sm:$0xff]
    %v330 = vld [vmem:[%s5 + $0x680] sm:$0xff]
    %v331 = vld [vmem:[%s5 + $0x688] sm:$0xff]
    %v332 = vld [vmem:[%s5 + $0x690] sm:$0xff]
    %v333 = vld [vmem:[%s5 + $0x698] sm:$0xff]
    %v334 = vld [vmem:[%s5 + $0x6a0] sm:$0xff]
    %v335 = vld [vmem:[%s5 + $0x6a8] sm:$0xff]
    %v336 = vld [vmem:[%s5 + $0x6b0] sm:$0xff]
    %v337 = vld [vmem:[%s5 + $0x6b8] sm:$0xff]
    %v338 = vld [vmem:[%s5 + $0x6c0] sm:$0xff]
    %v339 = vld [vmem:[%s5 + $0x6c8] sm:$0xff]
    %v340 = vld [vmem:[%s5 + $0x6d0] sm:$0xff]
    %v341 = vld [vmem:[%s5 + $0x6d8] sm:$0xff]
    %v342 = vld [vmem:[%s5 + $0x6e0] sm:$0xff]
    %v343 = vld [vmem:[%s5 + $0x6e8] sm:$0xff]
    %v344 = vld [vmem:[%s5 + $0x6f0] sm:$0xff]
    %v345 = vld [vmem:[%s5 + $0x6f8] sm:$0xff]
    %v346 = vld [vmem:[%s6] sm:$0x7f]
    %v348 = vperm.slane %v346, 0
    %v349 = vperm.slane %v346, 1
    %v350 = vperm.slane %v346, 2
    %v351 = vperm.slane %v346, 3
    %v352 = vperm.slane %v346, 4
    %v353 = vperm.slane %v346, 5
    %v354 = vperm.slane %v346, 6
    %362 = vmatpush.msra.mxu0 %v227
    %363 = vmatpush.msra.mxu0 %v220
    %364 = vmatpush.msra.mxu0 %v213
    %365 = vmatpush.msra.mxu0 %v206
    %366 = vmatpush.msra.mxu0 %v199
    %367 = vmatpush.msra.mxu0 %v192
    %368 = vmatpush.msra.mxu0 %v185
    %369 = vmatpush.msra.mxu0 %v178
    %370 = vmatpush.msra.mxu0 %v171
    %371 = vmatpush.msra.mxu0 %v164
    %372 = vmatpush.msra.mxu0 %v157
    %373 = vmatpush.msra.mxu0 %v150
    %374 = vmatpush.msra.mxu0 %v143
    %375 = vmatpush.msra.mxu0 %v136
    %376 = vmatpush.msra.mxu0 %v129
    %377 = vmatpush.msra.mxu0 %v122
    %378 = vmatmul.f32.gmra.mxu0 %v100
    %v379 = vpop.f32.mrf.mxu0
    %v380 = vadd.f32 %v348, %v379
    %381 = vdwg.mxu0
    %382 = vmatpush.msra.mxu0 %v339
    %383 = vmatpush.msra.mxu0 %v332
    %384 = vmatpush.msra.mxu0 %v325
    %385 = vmatpush.msra.mxu0 %v318
    %386 = vmatpush.msra.mxu0 %v311
    %387 = vmatpush.msra.mxu0 %v304
    %388 = vmatpush.msra.mxu0 %v297
    %389 = vmatpush.msra.mxu0 %v290
    %390 = vmatpush.msra.mxu0 %v283
    %391 = vmatpush.msra.mxu0 %v276
    %392 = vmatpush.msra.mxu0 %v269
    %393 = vmatpush.msra.mxu0 %v262
    %394 = vmatpush.msra.mxu0 %v255
    %395 = vmatpush.msra.mxu0 %v248
    %396 = vmatpush.msra.mxu0 %v241
    %397 = vmatpush.msra.mxu0 %v234
    %398 = vmatmul.f32.gmra.mxu0 %v120
    %v399 = vpop.f32.mrf.mxu0
    %v400 = vadd.f32 %v380, %v399
    %401 = vdwg.mxu0
    %402 = vmatpush.msra.mxu0 %v228
    %403 = vmatpush.msra.mxu0 %v221
    %404 = vmatpush.msra.mxu0 %v214
    %405 = vmatpush.msra.mxu0 %v207
    %406 = vmatpush.msra.mxu0 %v200
    %407 = vmatpush.msra.mxu0 %v193
    %408 = vmatpush.msra.mxu0 %v186
    %409 = vmatpush.msra.mxu0 %v179
    %410 = vmatpush.msra.mxu0 %v172
    %411 = vmatpush.msra.mxu0 %v165
    %412 = vmatpush.msra.mxu0 %v158
    %413 = vmatpush.msra.mxu0 %v151
    %414 = vmatpush.msra.mxu0 %v144
    %415 = vmatpush.msra.mxu0 %v137
    %416 = vmatpush.msra.mxu0 %v130
    %417 = vmatpush.msra.mxu0 %v123
    %418 = vmatmul.f32.gmra.mxu0 %v100
    %v419 = vpop.f32.mrf.mxu0
    %v420 = vadd.f32 %v349, %v419
    %421 = vdwg.mxu0
    %422 = vmatpush.msra.mxu0 %v340
    %423 = vmatpush.msra.mxu0 %v333
    %424 = vmatpush.msra.mxu0 %v326
    %425 = vmatpush.msra.mxu0 %v319
    %426 = vmatpush.msra.mxu0 %v312
    %427 = vmatpush.msra.mxu0 %v305
    %428 = vmatpush.msra.mxu0 %v298
    %429 = vmatpush.msra.mxu0 %v291
    %430 = vmatpush.msra.mxu0 %v284
    %431 = vmatpush.msra.mxu0 %v277
    %432 = vmatpush.msra.mxu0 %v270
    %433 = vmatpush.msra.mxu0 %v263
    %434 = vmatpush.msra.mxu0 %v256
    %435 = vmatpush.msra.mxu0 %v249
    %436 = vmatpush.msra.mxu0 %v242
    %437 = vmatpush.msra.mxu0 %v235
    %438 = vmatmul.f32.gmra.mxu0 %v120
    %v439 = vpop.f32.mrf.mxu0
    %v440 = vadd.f32 %v420, %v439
    %441 = vdwg.mxu0
    %442 = vmatpush.msra.mxu0 %v229
    %443 = vmatpush.msra.mxu0 %v222
    %444 = vmatpush.msra.mxu0 %v215
    %445 = vmatpush.msra.mxu0 %v208
    %446 = vmatpush.msra.mxu0 %v201
    %447 = vmatpush.msra.mxu0 %v194
    %448 = vmatpush.msra.mxu0 %v187
    %449 = vmatpush.msra.mxu0 %v180
    %450 = vmatpush.msra.mxu0 %v173
    %451 = vmatpush.msra.mxu0 %v166
    %452 = vmatpush.msra.mxu0 %v159
    %453 = vmatpush.msra.mxu0 %v152
    %454 = vmatpush.msra.mxu0 %v145
    %455 = vmatpush.msra.mxu0 %v138
    %456 = vmatpush.msra.mxu0 %v131
    %457 = vmatpush.msra.mxu0 %v124
    %458 = vmatmul.f32.gmra.mxu0 %v100
    %v459 = vpop.f32.mrf.mxu0
    %v460 = vadd.f32 %v350, %v459
    %461 = vdwg.mxu0
    %462 = vmatpush.msra.mxu0 %v341
    %463 = vmatpush.msra.mxu0 %v334
    %464 = vmatpush.msra.mxu0 %v327
    %465 = vmatpush.msra.mxu0 %v320
    %466 = vmatpush.msra.mxu0 %v313
    %467 = vmatpush.msra.mxu0 %v306
    %468 = vmatpush.msra.mxu0 %v299
    %469 = vmatpush.msra.mxu0 %v292
    %470 = vmatpush.msra.mxu0 %v285
    %471 = vmatpush.msra.mxu0 %v278
    %472 = vmatpush.msra.mxu0 %v271
    %473 = vmatpush.msra.mxu0 %v264
    %474 = vmatpush.msra.mxu0 %v257
    %475 = vmatpush.msra.mxu0 %v250
    %476 = vmatpush.msra.mxu0 %v243
    %477 = vmatpush.msra.mxu0 %v236
    %478 = vmatmul.f32.gmra.mxu0 %v120
    %v479 = vpop.f32.mrf.mxu0
    %v480 = vadd.f32 %v460, %v479
    %481 = vdwg.mxu0
    %482 = vmatpush.msra.mxu0 %v230
    %483 = vmatpush.msra.mxu0 %v223
    %484 = vmatpush.msra.mxu0 %v216
    %485 = vmatpush.msra.mxu0 %v209
    %486 = vmatpush.msra.mxu0 %v202
    %487 = vmatpush.msra.mxu0 %v195
    %488 = vmatpush.msra.mxu0 %v188
    %489 = vmatpush.msra.mxu0 %v181
    %490 = vmatpush.msra.mxu0 %v174
    %491 = vmatpush.msra.mxu0 %v167
    %492 = vmatpush.msra.mxu0 %v160
    %493 = vmatpush.msra.mxu0 %v153
    %494 = vmatpush.msra.mxu0 %v146
    %495 = vmatpush.msra.mxu0 %v139
    %496 = vmatpush.msra.mxu0 %v132
    %497 = vmatpush.msra.mxu0 %v125
    %498 = vmatmul.f32.gmra.mxu0 %v100
    %v499 = vpop.f32.mrf.mxu0
    %v500 = vadd.f32 %v351, %v499
    %501 = vdwg.mxu0
    %502 = vmatpush.msra.mxu0 %v342
    %503 = vmatpush.msra.mxu0 %v335
    %504 = vmatpush.msra.mxu0 %v328
    %505 = vmatpush.msra.mxu0 %v321
    %506 = vmatpush.msra.mxu0 %v314
    %507 = vmatpush.msra.mxu0 %v307
    %508 = vmatpush.msra.mxu0 %v300
    %509 = vmatpush.msra.mxu0 %v293
    %510 = vmatpush.msra.mxu0 %v286
    %511 = vmatpush.msra.mxu0 %v279
    %512 = vmatpush.msra.mxu0 %v272
    %513 = vmatpush.msra.mxu0 %v265
    %514 = vmatpush.msra.mxu0 %v258
    %515 = vmatpush.msra.mxu0 %v251
    %516 = vmatpush.msra.mxu0 %v244
    %517 = vmatpush.msra.mxu0 %v237
    %518 = vmatmul.f32.gmra.mxu0 %v120
    %v519 = vpop.f32.mrf.mxu0
    %v520 = vadd.f32 %v500, %v519
    %521 = vdwg.mxu0
    %522 = vmatpush.msra.mxu0 %v231
    %523 = vmatpush.msra.mxu0 %v224
    %524 = vmatpush.msra.mxu0 %v217
    %525 = vmatpush.msra.mxu0 %v210
    %526 = vmatpush.msra.mxu0 %v203
    %527 = vmatpush.msra.mxu0 %v196
    %528 = vmatpush.msra.mxu0 %v189
    %529 = vmatpush.msra.mxu0 %v182
    %530 = vmatpush.msra.mxu0 %v175
    %531 = vmatpush.msra.mxu0 %v168
    %532 = vmatpush.msra.mxu0 %v161
    %533 = vmatpush.msra.mxu0 %v154
    %534 = vmatpush.msra.mxu0 %v147
    %535 = vmatpush.msra.mxu0 %v140
    %536 = vmatpush.msra.mxu0 %v133
    %537 = vmatpush.msra.mxu0 %v126
    %538 = vmatmul.f32.gmra.mxu0 %v100
    %v539 = vpop.f32.mrf.mxu0
    %v540 = vadd.f32 %v352, %v539
    %541 = vdwg.mxu0
    %542 = vmatpush.msra.mxu0 %v343
    %543 = vmatpush.msra.mxu0 %v336
    %544 = vmatpush.msra.mxu0 %v329
    %545 = vmatpush.msra.mxu0 %v322
    %546 = vmatpush.msra.mxu0 %v315
    %547 = vmatpush.msra.mxu0 %v308
    %548 = vmatpush.msra.mxu0 %v301
    %549 = vmatpush.msra.mxu0 %v294
    %550 = vmatpush.msra.mxu0 %v287
    %551 = vmatpush.msra.mxu0 %v280
    %552 = vmatpush.msra.mxu0 %v273
    %553 = vmatpush.msra.mxu0 %v266
    %554 = vmatpush.msra.mxu0 %v259
    %555 = vmatpush.msra.mxu0 %v252
    %556 = vmatpush.msra.mxu0 %v245
    %557 = vmatpush.msra.mxu0 %v238
    %558 = vmatmul.f32.gmra.mxu0 %v120
    %v559 = vpop.f32.mrf.mxu0
    %v560 = vadd.f32 %v540, %v559
    %561 = vdwg.mxu0
    %562 = vmatpush.msra.mxu0 %v232
    %563 = vmatpush.msra.mxu0 %v225
    %564 = vmatpush.msra.mxu0 %v218
    %565 = vmatpush.msra.mxu0 %v211
    %566 = vmatpush.msra.mxu0 %v204
    %567 = vmatpush.msra.mxu0 %v197
    %568 = vmatpush.msra.mxu0 %v190
    %569 = vmatpush.msra.mxu0 %v183
    %570 = vmatpush.msra.mxu0 %v176
    %571 = vmatpush.msra.mxu0 %v169
    %572 = vmatpush.msra.mxu0 %v162
    %573 = vmatpush.msra.mxu0 %v155
    %574 = vmatpush.msra.mxu0 %v148
    %575 = vmatpush.msra.mxu0 %v141
    %576 = vmatpush.msra.mxu0 %v134
    %577 = vmatpush.msra.mxu0 %v127
    %578 = vmatmul.f32.gmra.mxu0 %v100
    %v579 = vpop.f32.mrf.mxu0
    %v580 = vadd.f32 %v353, %v579
    %581 = vdwg.mxu0
    %582 = vmatpush.msra.mxu0 %v344
    %583 = vmatpush.msra.mxu0 %v337
    %584 = vmatpush.msra.mxu0 %v330
    %585 = vmatpush.msra.mxu0 %v323
    %586 = vmatpush.msra.mxu0 %v316
    %587 = vmatpush.msra.mxu0 %v309
    %588 = vmatpush.msra.mxu0 %v302
    %589 = vmatpush.msra.mxu0 %v295
    %590 = vmatpush.msra.mxu0 %v288
    %591 = vmatpush.msra.mxu0 %v281
    %592 = vmatpush.msra.mxu0 %v274
    %593 = vmatpush.msra.mxu0 %v267
    %594 = vmatpush.msra.mxu0 %v260
    %595 = vmatpush.msra.mxu0 %v253
    %596 = vmatpush.msra.mxu0 %v246
    %597 = vmatpush.msra.mxu0 %v239
    %598 = vmatmul.f32.gmra.mxu0 %v120
    %v599 = vpop.f32.mrf.mxu0
    %v600 = vadd.f32 %v580, %v599
    %601 = vdwg.mxu0
    %602 = vmatpush.msra.mxu0 %v233
    %603 = vmatpush.msra.mxu0 %v226
    %604 = vmatpush.msra.mxu0 %v219
    %605 = vmatpush.msra.mxu0 %v212
    %606 = vmatpush.msra.mxu0 %v205
    %607 = vmatpush.msra.mxu0 %v198
    %608 = vmatpush.msra.mxu0 %v191
    %609 = vmatpush.msra.mxu0 %v184
    %610 = vmatpush.msra.mxu0 %v177
    %611 = vmatpush.msra.mxu0 %v170
    %612 = vmatpush.msra.mxu0 %v163
    %613 = vmatpush.msra.mxu0 %v156
    %614 = vmatpush.msra.mxu0 %v149
    %615 = vmatpush.msra.mxu0 %v142
    %616 = vmatpush.msra.mxu0 %v135
    %617 = vmatpush.msra.mxu0 %v128
    %618 = vmatmul.f32.gmra.mxu0 %v100
    %v619 = vpop.f32.mrf.mxu0
    %v620 = vadd.f32 %v354, %v619
    %621 = vdwg.mxu0
    %622 = vmatpush.msra.mxu0 %v345
    %623 = vmatpush.msra.mxu0 %v338
    %624 = vmatpush.msra.mxu0 %v331
    %625 = vmatpush.msra.mxu0 %v324
    %626 = vmatpush.msra.mxu0 %v317
    %627 = vmatpush.msra.mxu0 %v310
    %628 = vmatpush.msra.mxu0 %v303
    %629 = vmatpush.msra.mxu0 %v296
    %630 = vmatpush.msra.mxu0 %v289
    %631 = vmatpush.msra.mxu0 %v282
    %632 = vmatpush.msra.mxu0 %v275
    %633 = vmatpush.msra.mxu0 %v268
    %634 = vmatpush.msra.mxu0 %v261
    %635 = vmatpush.msra.mxu0 %v254
    %636 = vmatpush.msra.mxu0 %v247
    %637 = vmatpush.msra.mxu0 %v240
    %638 = vmatmul.f32.gmra.mxu0 %v120
    %v639 = vpop.f32.mrf.mxu0
    %v640 = vadd.f32 %v620, %v639
    %641 = vdwg.mxu0
    %v642 = vmax.f32 %v400, 0.0
    %v643 = vmax.f32 %v440, 0.0
    %v644 = vmax.f32 %v480, 0.0
    %v645 = vmax.f32 %v520, 0.0
    %v646 = vmax.f32 %v560, 0.0
    %v647 = vmax.f32 %v600, 0.0
    %v648 = vmax.f32 %v640, 0.0
    %v649 = vld [vmem:[%s7] sm:$0xff]
    %v650 = vld [vmem:[%s7 + $0x8] sm:$0xff]
    %v651 = vld [vmem:[%s7 + $0x10] sm:$0xff]
    %v652 = vld [vmem:[%s7 + $0x18] sm:$0xff]
    %v653 = vld [vmem:[%s7 + $0x20] sm:$0xff]
    %v654 = vld [vmem:[%s7 + $0x28] sm:$0xff]
    %v655 = vld [vmem:[%s7 + $0x30] sm:$0xff]
    %v656 = vld [vmem:[%s7 + $0x38] sm:$0xff]
    %v657 = vld [vmem:[%s7 + $0x40] sm:$0xff]
    %v658 = vld [vmem:[%s7 + $0x48] sm:$0xff]
    %v659 = vld [vmem:[%s7 + $0x50] sm:$0xff]
    %v660 = vld [vmem:[%s7 + $0x58] sm:$0xff]
    %v661 = vld [vmem:[%s7 + $0x60] sm:$0xff]
    %v662 = vld [vmem:[%s7 + $0x68] sm:$0xff]
    %v663 = vld [vmem:[%s7 + $0x70] sm:$0xff]
    %v664 = vld [vmem:[%s7 + $0x78] sm:$0xff]
    %v665 = vld [vmem:[%s7 + $0x80] sm:$0xff]
    %v666 = vld [vmem:[%s7 + $0x88] sm:$0xff]
    %v667 = vld [vmem:[%s7 + $0x90] sm:$0xff]
    %v668 = vld [vmem:[%s7 + $0x98] sm:$0xff]
    %v669 = vld [vmem:[%s7 + $0xa0] sm:$0xff]
    %v670 = vld [vmem:[%s7 + $0xa8] sm:$0xff]
    %v671 = vld [vmem:[%s7 + $0xb0] sm:$0xff]
    %v672 = vld [vmem:[%s7 + $0xb8] sm:$0xff]
    %v673 = vld [vmem:[%s7 + $0xc0] sm:$0xff]
    %v674 = vld [vmem:[%s7 + $0xc8] sm:$0xff]
    %v675 = vld [vmem:[%s7 + $0xd0] sm:$0xff]
    %v676 = vld [vmem:[%s7 + $0xd8] sm:$0xff]
    %v677 = vld [vmem:[%s7 + $0xe0] sm:$0xff]
    %v678 = vld [vmem:[%s7 + $0xe8] sm:$0xff]
    %v679 = vld [vmem:[%s7 + $0xf0] sm:$0xff]
    %v680 = vld [vmem:[%s7 + $0xf8] sm:$0xff]
    %v681 = vld [vmem:[%s7 + $0x100] sm:$0xff]
    %v682 = vld [vmem:[%s7 + $0x108] sm:$0xff]
    %v683 = vld [vmem:[%s7 + $0x110] sm:$0xff]
    %v684 = vld [vmem:[%s7 + $0x118] sm:$0xff]
    %v685 = vld [vmem:[%s7 + $0x120] sm:$0xff]
    %v686 = vld [vmem:[%s7 + $0x128] sm:$0xff]
    %v687 = vld [vmem:[%s7 + $0x130] sm:$0xff]
    %v688 = vld [vmem:[%s7 + $0x138] sm:$0xff]
    %v689 = vld [vmem:[%s7 + $0x140] sm:$0xff]
    %v690 = vld [vmem:[%s7 + $0x148] sm:$0xff]
    %v691 = vld [vmem:[%s7 + $0x150] sm:$0xff]
    %v692 = vld [vmem:[%s7 + $0x158] sm:$0xff]
    %v693 = vld [vmem:[%s7 + $0x160] sm:$0xff]
    %v694 = vld [vmem:[%s7 + $0x168] sm:$0xff]
    %v695 = vld [vmem:[%s7 + $0x170] sm:$0xff]
    %v696 = vld [vmem:[%s7 + $0x178] sm:$0xff]
    %v697 = vld [vmem:[%s7 + $0x180] sm:$0xff]
    %v698 = vld [vmem:[%s7 + $0x188] sm:$0xff]
    %v699 = vld [vmem:[%s7 + $0x190] sm:$0xff]
    %v700 = vld [vmem:[%s7 + $0x198] sm:$0xff]
    %v701 = vld [vmem:[%s7 + $0x1a0] sm:$0xff]
    %v702 = vld [vmem:[%s7 + $0x1a8] sm:$0xff]
    %v703 = vld [vmem:[%s7 + $0x1b0] sm:$0xff]
    %v704 = vld [vmem:[%s7 + $0x1b8] sm:$0xff]
    %v705 = vld [vmem:[%s7 + $0x1c0] sm:$0xff]
    %v706 = vld [vmem:[%s7 + $0x1c8] sm:$0xff]
    %v707 = vld [vmem:[%s7 + $0x1d0] sm:$0xff]
    %v708 = vld [vmem:[%s7 + $0x1d8] sm:$0xff]
    %v709 = vld [vmem:[%s7 + $0x1e0] sm:$0xff]
    %v710 = vld [vmem:[%s7 + $0x1e8] sm:$0xff]
    %v711 = vld [vmem:[%s7 + $0x1f0] sm:$0xff]
    %v712 = vld [vmem:[%s7 + $0x1f8] sm:$0xff]
    %v713 = vld [vmem:[%s7 + $0x200] sm:$0xff]
    %v714 = vld [vmem:[%s7 + $0x208] sm:$0xff]
    %v715 = vld [vmem:[%s7 + $0x210] sm:$0xff]
    %v716 = vld [vmem:[%s7 + $0x218] sm:$0xff]
    %v717 = vld [vmem:[%s7 + $0x220] sm:$0xff]
    %v718 = vld [vmem:[%s7 + $0x228] sm:$0xff]
    %v719 = vld [vmem:[%s7 + $0x230] sm:$0xff]
    %v720 = vld [vmem:[%s7 + $0x238] sm:$0xff]
    %v721 = vld [vmem:[%s7 + $0x240] sm:$0xff]
    %v722 = vld [vmem:[%s7 + $0x248] sm:$0xff]
    %v723 = vld [vmem:[%s7 + $0x250] sm:$0xff]
    %v724 = vld [vmem:[%s7 + $0x258] sm:$0xff]
    %v725 = vld [vmem:[%s7 + $0x260] sm:$0xff]
    %v726 = vld [vmem:[%s7 + $0x268] sm:$0xff]
    %v727 = vld [vmem:[%s7 + $0x270] sm:$0xff]
    %v728 = vld [vmem:[%s7 + $0x278] sm:$0xff]
    %v729 = vld [vmem:[%s7 + $0x280] sm:$0xff]
    %v730 = vld [vmem:[%s7 + $0x288] sm:$0xff]
    %v731 = vld [vmem:[%s7 + $0x290] sm:$0xff]
    %v732 = vld [vmem:[%s7 + $0x298] sm:$0xff]
    %v733 = vld [vmem:[%s7 + $0x2a0] sm:$0xff]
    %v734 = vld [vmem:[%s7 + $0x2a8] sm:$0xff]
    %v735 = vld [vmem:[%s7 + $0x2b0] sm:$0xff]
    %v736 = vld [vmem:[%s7 + $0x2b8] sm:$0xff]
    %v737 = vld [vmem:[%s7 + $0x2c0] sm:$0xff]
    %v738 = vld [vmem:[%s7 + $0x2c8] sm:$0xff]
    %v739 = vld [vmem:[%s7 + $0x2d0] sm:$0xff]
    %v740 = vld [vmem:[%s7 + $0x2d8] sm:$0xff]
    %v741 = vld [vmem:[%s7 + $0x2e0] sm:$0xff]
    %v742 = vld [vmem:[%s7 + $0x2e8] sm:$0xff]
    %v743 = vld [vmem:[%s7 + $0x2f0] sm:$0xff]
    %v744 = vld [vmem:[%s7 + $0x2f8] sm:$0xff]
    %v745 = vld [vmem:[%s7 + $0x300] sm:$0xff]
    %v746 = vld [vmem:[%s7 + $0x308] sm:$0xff]
    %v747 = vld [vmem:[%s7 + $0x310] sm:$0xff]
    %v748 = vld [vmem:[%s7 + $0x318] sm:$0xff]
    %v749 = vld [vmem:[%s8] sm:$0x1]
    %v751 = vperm.slane %v749, 0
    %v754 = vsel %vm78, %v648, 0
    %756 = vmatpush.msra.mxu0 %v664
    %757 = vmatpush.msra.mxu0 %v663
    %758 = vmatpush.msra.mxu0 %v662
    %759 = vmatpush.msra.mxu0 %v661
    %760 = vmatpush.msra.mxu0 %v660
    %761 = vmatpush.msra.mxu0 %v659
    %762 = vmatpush.msra.mxu0 %v658
    %763 = vmatpush.msra.mxu0 %v657
    %764 = vmatpush.msra.mxu0 %v656
    %765 = vmatpush.msra.mxu0 %v655
    %766 = vmatpush.msra.mxu0 %v654
    %767 = vmatpush.msra.mxu0 %v653
    %768 = vmatpush.msra.mxu0 %v652
    %769 = vmatpush.msra.mxu0 %v651
    %770 = vmatpush.msra.mxu0 %v650
    %771 = vmatpush.msra.mxu0 %v649
    %772 = vmatmul.f32.gmra.mxu0 %v642
    %v773 = vpop.f32.mrf.mxu0
    %v774 = vadd.f32 %v751, %v773
    %775 = vdwg.mxu0
    %776 = vmatpush.msra.mxu0 %v680
    %777 = vmatpush.msra.mxu0 %v679
    %778 = vmatpush.msra.mxu0 %v678
    %779 = vmatpush.msra.mxu0 %v677
    %780 = vmatpush.msra.mxu0 %v676
    %781 = vmatpush.msra.mxu0 %v675
    %782 = vmatpush.msra.mxu0 %v674
    %783 = vmatpush.msra.mxu0 %v673
    %784 = vmatpush.msra.mxu0 %v672
    %785 = vmatpush.msra.mxu0 %v671
    %786 = vmatpush.msra.mxu0 %v670
    %787 = vmatpush.msra.mxu0 %v669
    %788 = vmatpush.msra.mxu0 %v668
    %789 = vmatpush.msra.mxu0 %v667
    %790 = vmatpush.msra.mxu0 %v666
    %791 = vmatpush.msra.mxu0 %v665
    %792 = vmatmul.f32.gmra.mxu0 %v643
    %v793 = vpop.f32.mrf.mxu0
    %v794 = vadd.f32 %v774, %v793
    %795 = vdwg.mxu0
    %796 = vmatpush.msra.mxu0 %v696
    %797 = vmatpush.msra.mxu0 %v695
    %798 = vmatpush.msra.mxu0 %v694
    %799 = vmatpush.msra.mxu0 %v693
    %800 = vmatpush.msra.mxu0 %v692
    %801 = vmatpush.msra.mxu0 %v691
    %802 = vmatpush.msra.mxu0 %v690
    %803 = vmatpush.msra.mxu0 %v689
    %804 = vmatpush.msra.mxu0 %v688
    %805 = vmatpush.msra.mxu0 %v687
    %806 = vmatpush.msra.mxu0 %v686
    %807 = vmatpush.msra.mxu0 %v685
    %808 = vmatpush.msra.mxu0 %v684
    %809 = vmatpush.msra.mxu0 %v683
    %810 = vmatpush.msra.mxu0 %v682
    %811 = vmatpush.msra.mxu0 %v681
    %812 = vmatmul.f32.gmra.mxu0 %v644
    %v813 = vpop.f32.mrf.mxu0
    %v814 = vadd.f32 %v794, %v813
    %815 = vdwg.mxu0
    %816 = vmatpush.msra.mxu0 %v712
    %817 = vmatpush.msra.mxu0 %v711
    %818 = vmatpush.msra.mxu0 %v710
    %819 = vmatpush.msra.mxu0 %v709
    %820 = vmatpush.msra.mxu0 %v708
    %821 = vmatpush.msra.mxu0 %v707
    %822 = vmatpush.msra.mxu0 %v706
    %823 = vmatpush.msra.mxu0 %v705
    %824 = vmatpush.msra.mxu0 %v704
    %825 = vmatpush.msra.mxu0 %v703
    %826 = vmatpush.msra.mxu0 %v702
    %827 = vmatpush.msra.mxu0 %v701
    %828 = vmatpush.msra.mxu0 %v700
    %829 = vmatpush.msra.mxu0 %v699
    %830 = vmatpush.msra.mxu0 %v698
    %831 = vmatpush.msra.mxu0 %v697
    %832 = vmatmul.f32.gmra.mxu0 %v645
    %v833 = vpop.f32.mrf.mxu0
    %v834 = vadd.f32 %v814, %v833
    %835 = vdwg.mxu0
    %836 = vmatpush.msra.mxu0 %v728
    %837 = vmatpush.msra.mxu0 %v727
    %838 = vmatpush.msra.mxu0 %v726
    %839 = vmatpush.msra.mxu0 %v725
    %840 = vmatpush.msra.mxu0 %v724
    %841 = vmatpush.msra.mxu0 %v723
    %842 = vmatpush.msra.mxu0 %v722
    %843 = vmatpush.msra.mxu0 %v721
    %844 = vmatpush.msra.mxu0 %v720
    %845 = vmatpush.msra.mxu0 %v719
    %846 = vmatpush.msra.mxu0 %v718
    %847 = vmatpush.msra.mxu0 %v717
    %848 = vmatpush.msra.mxu0 %v716
    %849 = vmatpush.msra.mxu0 %v715
    %850 = vmatpush.msra.mxu0 %v714
    %851 = vmatpush.msra.mxu0 %v713
    %852 = vmatmul.f32.gmra.mxu0 %v646
    %v853 = vpop.f32.mrf.mxu0
    %v854 = vadd.f32 %v834, %v853
    %855 = vdwg.mxu0
    %856 = vmatpush.msra.mxu0 %v744
    %857 = vmatpush.msra.mxu0 %v743
    %858 = vmatpush.msra.mxu0 %v742
    %859 = vmatpush.msra.mxu0 %v741
    %860 = vmatpush.msra.mxu0 %v740
    %861 = vmatpush.msra.mxu0 %v739
    %862 = vmatpush.msra.mxu0 %v738
    %863 = vmatpush.msra.mxu0 %v737
    %864 = vmatpush.msra.mxu0 %v736
    %865 = vmatpush.msra.mxu0 %v735
    %866 = vmatpush.msra.mxu0 %v734
    %867 = vmatpush.msra.mxu0 %v733
    %868 = vmatpush.msra.mxu0 %v732
    %869 = vmatpush.msra.mxu0 %v731
    %870 = vmatpush.msra.mxu0 %v730
    %871 = vmatpush.msra.mxu0 %v729
    %872 = vmatmul.f32.gmra.mxu0 %v647
    %v873 = vpop.f32.mrf.mxu0
    %v874 = vadd.f32 %v854, %v873
    %875 = vdwg.mxu0
    %876 = vmatpush.msra.mxu0 0.0
    %877 = vmatpush.msra.mxu0 0.0
    %878 = vmatpush.msra.mxu0 0.0
    %879 = vmatpush.msra.mxu0 0.0
    %880 = vmatpush.msra.mxu0 0.0
    %881 = vmatpush.msra.mxu0 0.0
    %882 = vmatpush.msra.mxu0 0.0
    %883 = vmatpush.msra.mxu0 0.0
    %884 = vmatpush.msra.mxu0 0.0
    %885 = vmatpush.msra.mxu0 0.0
    %886 = vmatpush.msra.mxu0 0.0
    %887 = vmatpush.msra.mxu0 0.0
    %888 = vmatpush.msra.mxu0 %v748
    %889 = vmatpush.msra.mxu0 %v747
    %890 = vmatpush.msra.mxu0 %v746
    %891 = vmatpush.msra.mxu0 %v745
    %892 = vmatmul.f32.gmra.mxu0 %v754
    %v893 = vpop.f32.mrf.mxu0
    %v894 = vadd.f32 %v874, %v893
    %895 = vdwg.mxu0
    %v896 = vxor.u32 %v894, 2147483648
    %v897 = vmul.f32 %v896, 1.442695
    %v898 = vpow.pop %v897
    %v899 = vadd.f32 %v898, 1.0
    %v900 = vrcp.pop %v899
    %v901 = vmul.f32 %v899, %v900
    %v902 = vsub.f32 1.0, %v901
    %v903 = vmul.f32 %v900, %v902
    %v904 = vadd.f32 %v900, %v903
    %vm905 = vweird.f32 %v899
    %vm906 = vweird.f32 %v900
    %vm907 = vmor %vm905, %vm906
    %v908 = vsel %vm907, %v900, %v904
    %v909 = vand.u32 2147483647, %v899
    %vm910 = vcmp.eq.f32.partialorder %v909, 8.507059e+37
    %v911 = vand.u32 %v899, 2147483648
    %v912 = vor.u32 1.1754944e-38, %v911
    %v913 = vsel %vm910, %v912, %v908
    %v914 = vmul.f32 1.0, %v913
    %vm915 = vcmask 517120
    %916 = vst.msk [vmem:[#allocation2] sm:$0x3] %vm915, %v914
    // Predicated region
    $region38: #{tpu_custom_call.1} parent=1 // pred_check
      _
    $region39: #{tpu_custom_call.1} parent=1 // pred_check_branch
      %918 = sbr.rel (0) target = $region41
    $region40: #{tpu_custom_call.1} parent=1 // pred_region
      %920 = vsyncadd [#allocation3], 0
      %s922 = sshll.u32 [#allocation2], 4
      %s923 = int_to_ptr.vmem [resolvable:$true] %s922
      %s924 = sshll.u32 %s9, 4
      %s925 = int_to_ptr.hbm [resolvable:$true] %s924
      %927 = dma.vmem_to_hbm [thread:$0]  %s923, 32, %s925, [#allocation3]
    $region41: #{tpu_custom_call.1} parent=1 // pred_fallthru
      _
    // Predicated region
    $region42: #{tpu_custom_call.1} parent=1 // pred_check
      _
    $region43: #{tpu_custom_call.1} parent=1 // pred_check_branch
      %929 = sbr.rel (0) target = $region45
    $region44: #{tpu_custom_call.1} parent=1 // pred_region
      %931 = dma.done [#allocation3], 32
    $region45: #{tpu_custom_call.1} parent=1 // pred_fallthru
      _
    %932 = vsyncpa [#allocation3], 1

</llo_original>
